<compile_context>
chip_gen: v5e
topology: v5e:2x2
jax: 0.10.0
libtpu: 0.0.40
codegen_flags: <defaults>
</compile_context>

<pallas_src>
import jax
import jax.numpy as jnp
from jax import lax
from jax.experimental import pallas as pl
from jax.experimental.pallas import tpu as pltpu


# ----------------------------- hardware heuristics -----------------------------

def _tpu_plan():
    """Returns (num_tensorcores, vmem_limit_bytes, W1-double-buffer budget)."""
    try:
        kind = jax.devices()[0].device_kind.lower()
    except Exception:
        kind = ""
    if "v5" in kind:          # v5e/v5p: 1 TC, 128 MiB physical VMEM (16 MiB scoped default)
        return 1, 48 << 20, 12 << 20
    if "v6" in kind:          # v6e: 1 TC, 128 MiB physical VMEM
        return 1, 64 << 20, 16 << 20
    if "7" in kind:           # v7x: 2 TCs, 64 MiB VMEM per TC -> stay well under
        return 2, 28 << 20, 8 << 20
    return 1, 32 << 20, 8 << 20


def _plan_tiling(D, H, num_tc, w1_budget):
    """Pick (parts, tiles_per_part, tile_n, padded_H) for the fused hidden dim."""
    parts = num_tc if (num_tc > 1 and H >= num_tc * 128) else 1
    # Double-buffered bf16 W1 tile costs 2 * D * tn * 2 bytes -> tn from budget.
    tn = (w1_budget // (4 * D)) // 128 * 128
    tn = max(128, min(4096, tn))
    per_part = (H + parts - 1) // parts
    per_part = ((per_part + 127) // 128) * 128
    tn = min(tn, per_part)
    kpp = (per_part + tn - 1) // tn
    h_pad = parts * kpp * tn
    return parts, kpp, tn, h_pad


# ---------------------------------- kernel -------------------------------------

def _fused_mlp_kernel(x_ref, w1_ref, b1_ref, w2t_ref, b2_ref, out_ref, acc_ref):
    """One hidden-dim tile of relu(x @ W1 + b1) @ W2, accumulated in f32."""
    p = pl.program_id(0)
    k = pl.program_id(1)

    @pl.when(k == 0)
    def _():
        acc_ref[...] = jnp.zeros_like(acc_ref)

    # bf16 x bf16 -> f32 on the MXU, then bias + ReLU in f32.
    h = jnp.dot(x_ref[...], w1_ref[...], preferred_element_type=jnp.float32)
    h = jnp.maximum(h + b1_ref[...], 0.0)   # Dropout(0.1) is identity at inference
    # Lane-dense (C, tn) W2^T tile: contract the last dims of both (NT matmul).
    acc_ref[...] += lax.dot_general(
        h, w2t_ref[...], (((1,), (1,)), ((), ())),
        preferred_element_type=jnp.float32)

    @pl.when(k == pl.num_programs(1) - 1)
    def _():
        # b2 is folded into the finalize; only the p == 0 part adds it so the
        # cross-part sum (when parts > 1) sees it exactly once.
        res = acc_ref[...] + (p == 0).astype(jnp.float32) * b2_ref[...]
        if len(out_ref.shape) == 3:      # (1, B, C) partial slab (parts > 1)
            out_ref[0] = res
        else:                            # (B, C) final output (parts == 1)
            out_ref[...] = res


def _fused_mlp_heads(x_bf16, head, vmem_limit):
    """x_bf16: (B, D) bf16. head: prepared dict. Returns (B, C) f32."""
    B, D = x_bf16.shape
    w1, b1, w2t, b2 = head["w1"], head["b1"], head["w2t"], head["b2"]
    parts, kpp, tn = head["parts"], head["kpp"], head["tn"]
    H = w1.shape[1]
    C = w2t.shape[0]

    if parts == 1:
        out_shape = jax.ShapeDtypeStruct((B, C), jnp.float32)
        out_spec = pl.BlockSpec((B, C), lambda p, k: (0, 0))
    else:
        out_shape = jax.ShapeDtypeStruct((parts, B, C), jnp.float32)
        out_spec = pl.BlockSpec((1, B, C), lambda p, k: (p, 0, 0))

    flops = 2 * B * D * H + 2 * B * H * C
    bytes_accessed = (x_bf16.size * 2 + w1.size * 2 + b1.size * 4
                      + w2t.size * 4 + b2.size * 4 + parts * B * C * 4)

    # TODO(synk): on v7x, W1 could optionally stream as fp8 (e4m3) / int8 on
    # v6e with per-channel scales folded into b1/W2^T for another ~2x on the
    # dominant HBM stream, if QE score tolerance allows.
    result = pl.pallas_call(
        _fused_mlp_kernel,
        out_shape=out_shape,
        grid_spec=pltpu.PrefetchScalarGridSpec(
            num_scalar_prefetch=0,
            grid=(parts, kpp),
            in_specs=[
                pl.BlockSpec((B, D), lambda p, k: (0, 0)),             # x resident
                pl.BlockSpec((D, tn), lambda p, k: (0, p * kpp + k)),  # W1 stream (bf16)
                pl.BlockSpec((1, tn), lambda p, k: (0, p * kpp + k)),  # b1 stream
                pl.BlockSpec((C, tn), lambda p, k: (0, p * kpp + k)),  # W2^T stream (lane-dense)
                pl.BlockSpec((1, C), lambda p, k: (0, 0)),             # b2 resident
            ],
            out_specs=out_spec,
            scratch_shapes=[pltpu.VMEM((B, C), jnp.float32)],
        ),
        compiler_params=pltpu.CompilerParams(
            dimension_semantics=("parallel", "arbitrary"),
            vmem_limit_bytes=int(vmem_limit)),
        cost_estimate=pl.CostEstimate(
            flops=flops, transcendentals=0, bytes_accessed=bytes_accessed),
    )(x_bf16, w1, b1, w2t, b2)

    if parts == 1:
        return result                 # b2 already added in-kernel; no post-ops
    return jnp.sum(result, axis=0)    # v7x: combine the per-TensorCore partials


# ---------------------------- parameter preparation ----------------------------

def _pad_last(a, target):
    pad = target - a.shape[-1]
    if pad == 0:
        return a
    return jnp.pad(a, [(0, 0)] * (a.ndim - 1) + [(0, pad)])


def _prep_head_arrays(w1, b1, w2t, b2, num_tc, w1_budget):
    D, H = w1.shape
    parts, kpp, tn, h_pad = _plan_tiling(D, H, num_tc, w1_budget)
    return dict(
        w1=_pad_last(w1, h_pad).astype(jnp.bfloat16),    # (D, H_pad) bf16 stream
        b1=_pad_last(b1, h_pad).astype(jnp.float32),     # (1, H_pad)
        w2t=_pad_last(w2t, h_pad).astype(jnp.float32),   # (C, H_pad) lane-dense
        b2=b2.astype(jnp.float32),                       # (1, C)
        parts=parts, kpp=kpp, tn=tn)


def _cast_single_head(head, num_tc, w1_budget):
    w1, b1, w2, b2 = head
    return _prep_head_arrays(w1, b1, w2.T, b2, num_tc, w1_budget)


def _fuse_dual_head(head_lcode, head_all, num_tc, w1_budget):
    """Fuse lcode + all_all heads: W1 -> (D, 8D), W2^T -> block-diag (2, 8D)."""
    w1l, b1l, w2l, b2l = head_lcode
    w1a, b1a, w2a, b2a = head_all
    hdim = w1l.shape[1]                                            # 4D
    w1 = jnp.concatenate([w1l, w1a], axis=1)                       # (D, 8D)
    b1 = jnp.concatenate([b1l, b1a], axis=1)                       # (1, 8D)
    zt = jnp.zeros((1, hdim), jnp.float32)
    w2t = jnp.concatenate(
        [jnp.concatenate([w2l.T.astype(jnp.float32), zt], axis=1),   # row 0: lcode head
         jnp.concatenate([zt, w2a.T.astype(jnp.float32)], axis=1)],  # row 1: all_all head
        axis=0)                                                      # (2, 8D)
    b2 = jnp.concatenate([b2l, b2a], axis=1)                         # (1, 2)
    return _prep_head_arrays(w1, b1, w2t, b2, num_tc, w1_budget)


def prepare_qe_params(raw_params, lcodes):
    """Precompute fused / bf16-cast / zero-padded weights once at load time."""
    num_tc, vmem_limit, w1_budget = _tpu_plan()
    prepared = {
        "_vmem_limit": vmem_limit,
        "all_all": _cast_single_head(raw_params["all_all"], num_tc, w1_budget),
    }
    for lcode in lcodes:
        key = "_".join(lcode)
        prepared[key] = _fuse_dual_head(raw_params[key], raw_params["all_all"],
                                        num_tc, w1_budget)
    return prepared


# --------------------------------- forward ------------------------------------

def qe_forward(joint_encodings, prepared_params, lcode):
    """Mirrors QE.forward with use_word_probs=False (inference mode).

    joint_encodings: (B, S, D) f32 — stands in for `self.transformer(**input[0])[0]`.
    """
    # TODO(synk): the external `self.transformer` backbone and the
    # use_word_probs=True branch (wp_ff + 3x nn.TransformerEncoderLayer) are
    # outside the default config and are not implemented here.
    key = "_".join(lcode)
    vmem_limit = prepared_params["_vmem_limit"]
    # CLS token, cast to bf16 so both MXU operands stream at half width.
    # TODO(synk): for production throughput pack many CLS vectors (B ~ 128-256)
    # into one call — the W1 HBM stream dominates and is batch-independent.
    enc = joint_encodings[:, 0, :].astype(jnp.bfloat16)
    if key != "all_all":
        o = _fused_mlp_heads(enc, prepared_params[key], vmem_limit)   # (B, 2)
        o_l = o[:, 0:1]
        o_a = o[:, 1:2]
        return o_l, (o_l + o_a) * 0.5
    o = _fused_mlp_heads(enc, prepared_params["all_all"], vmem_limit)  # (B, 1)
    return o, None


if __name__ == "__main__":
    B, S, D = 2, 8, 32            # batch=2, seq=8, hidden dim=32
    key = jax.random.PRNGKey(0)
    k_enc, k_head_l, k_head_a = jax.random.split(key, 3)

    # Stand-in for the external transformer's output [0]: (B, S, D)
    joint_encodings = jax.random.normal(k_enc, (B, S, D), dtype=jnp.float32)

    def init_head(k):
        k1, k2, k3, k4 = jax.random.split(k, 4)
        w1 = jax.random.normal(k1, (D, 4 * D), dtype=jnp.float32) * 0.05
        b1 = jax.random.normal(k2, (1, 4 * D), dtype=jnp.float32) * 0.05
        w2 = jax.random.normal(k3, (4 * D, 1), dtype=jnp.float32) * 0.05
        b2 = jax.random.normal(k4, (1, 1), dtype=jnp.float32) * 0.05
        return (w1, b1, w2, b2)

    # lcodes = [('en', 'de')]  ->  heads: 'all_all' and 'en_de'
    raw_params = {"en_de": init_head(k_head_l), "all_all": init_head(k_head_a)}
    prepared = prepare_qe_params(raw_params, lcodes=[("en", "de")])

    # Case 1: lcode != 'all_all'  (fused dual-head kernel)
    out, out_avg = qe_forward(joint_encodings, prepared, ("en", "de"))
    out, out_avg = jax.block_until_ready((out, out_avg))

    # Case 2: lcode == 'all_all'  (single-head kernel)
    out_all, none_out = qe_forward(joint_encodings, prepared, ("all", "all"))
    out_all = jax.block_until_ready(out_all)
    assert none_out is None

    # Pure-JAX reference with the same bf16 quantization of x and W1.
    enc_q = joint_encodings[:, 0, :].astype(jnp.bfloat16).astype(jnp.float32)

    def ref_head(x, w1, b1, w2, b2):
        w1q = w1.astype(jnp.bfloat16).astype(jnp.float32)
        h = jnp.maximum(x @ w1q + b1, 0.0)
        return h @ w2 + b2

    ref_l = ref_head(enc_q, *raw_params["en_de"])
    ref_a = ref_head(enc_q, *raw_params["all_all"])

    assert out.shape == (B, 1) and out_avg.shape == (B, 1) and out_all.shape == (B, 1)
    assert jnp.allclose(out, ref_l, atol=2e-4), "lcode head mismatch"
    assert jnp.allclose(out_avg, (ref_l + ref_a) * 0.5, atol=2e-4), "avg mismatch"
    assert jnp.allclose(out_all, ref_a, atol=2e-4), "all_all head mismatch"

    print("KERNEL_OK")
</pallas_src>

<mosaic_0001>
module attributes {stable_mosaic.version = 11 : i64} {
  func.func @_fused_mlp_kernel(%arg0: i32, %arg1: i32, %arg2: memref<2x32xbf16, #tpu.memory_space<vmem>>, %arg3: memref<32x256xbf16, #tpu.memory_space<vmem>>, %arg4: memref<1x256xf32, #tpu.memory_space<vmem>>, %arg5: memref<2x256xf32, #tpu.memory_space<vmem>>, %arg6: memref<1x2xf32, #tpu.memory_space<vmem>>, %arg7: memref<2x2xf32, #tpu.memory_space<vmem>>, %arg8: memref<2x2xf32, #tpu.memory_space<vmem>>) attributes {dimension_semantics = [#tpu.dimension_semantics<parallel>, #tpu.dimension_semantics<arbitrary>], iteration_bounds = array<i64: 1, 1>, scalar_prefetch = 0 : i64, scratch_operands = 1 : i64, tpu.core_type = #tpu.core_type<tc>, window_params = [{pipeline_mode = #tpu.pipeline_mode<synchronous>, transform_indices = @transform_0, window_bounds = array<i64: 2, 32>}, {transform_indices = @transform_1, window_bounds = array<i64: 32, 256>}, {transform_indices = @transform_2, window_bounds = array<i64: 1, 256>}, {transform_indices = @transform_3, window_bounds = array<i64: 2, 256>}, {pipeline_mode = #tpu.pipeline_mode<synchronous>, transform_indices = @transform_4, window_bounds = array<i64: 1, 2>}, {pipeline_mode = #tpu.pipeline_mode<synchronous>, transform_indices = @transform_5, window_bounds = array<i64: 2, 2>}]} {
    %c0_i32 = arith.constant 0 : i32
    %0 = arith.cmpi eq, %arg1, %c0_i32 : i32
    %1 = arith.extui %0 : i1 to i32
    %c0_i32_0 = arith.constant 0 : i32
    %2 = arith.cmpi ne, %1, %c0_i32_0 : i32
    scf.if %2 {
      %cst_16 = arith.constant 0.000000e+00 : f32
      %19 = vector.broadcast %cst_16 : f32 to vector<2x2xf32>
      %c0_17 = arith.constant 0 : index
      %c0_18 = arith.constant 0 : index
      %20 = vector.load %arg8[%c0_17, %c0_18] : memref<2x2xf32, #tpu.memory_space<vmem>>, vector<2x2xf32>
      tpu.vector_store %arg8[%c0_17, %c0_18], %19 {strides = array<i32>} : memref<2x2xf32, #tpu.memory_space<vmem>>, vector<2x2xf32>,
    } else {
    }
    %c0 = arith.constant 0 : index
    %c0_1 = arith.constant 0 : index
    %3 = vector.load %arg2[%c0, %c0_1] : memref<2x32xbf16, #tpu.memory_space<vmem>>, vector<2x32xbf16>
    %c0_2 = arith.constant 0 : index
    %c0_3 = arith.constant 0 : index
    %4 = vector.load %arg3[%c0_2, %c0_3] : memref<32x256xbf16, #tpu.memory_space<vmem>>, vector<32x256xbf16>
    %cst = arith.constant dense<0.000000e+00> : vector<2x256xf32>
    %5 = tpu.matmul %3, %4, %cst {dimension_numbers = #tpu.dot_dimension_numbers<[1], [0], [0], [1], [0, 0, 1, 1], [], []>} : vector<2x32xbf16>, vector<32x256xbf16>, vector<2x256xf32> -> vector<2x256xf32>
    %c0_4 = arith.constant 0 : index
    %c0_5 = arith.constant 0 : index
    %6 = vector.load %arg4[%c0_4, %c0_5] : memref<1x256xf32, #tpu.memory_space<vmem>>, vector<1x256xf32>
    %7 = vector.broadcast %6 : vector<1x256xf32> to vector<2x256xf32>
    %8 = arith.addf %5, %7 : vector<2x256xf32>
    %cst_6 = arith.constant 0.000000e+00 : f32
    %9 = vector.broadcast %cst_6 : f32 to vector<2x256xf32>
    %10 = arith.maximumf %8, %9 : vector<2x256xf32>
    %c0_7 = arith.constant 0 : index
    %c0_8 = arith.constant 0 : index
    %11 = vector.load %arg8[%c0_7, %c0_8] : memref<2x2xf32, #tpu.memory_space<vmem>>, vector<2x2xf32>
    %c0_9 = arith.constant 0 : index
    %c0_10 = arith.constant 0 : index
    %12 = vector.load %arg5[%c0_9, %c0_10] : memref<2x256xf32, #tpu.memory_space<vmem>>, vector<2x256xf32>
    %cst_11 = arith.constant dense<0.000000e+00> : vector<2x2xf32>
    %13 = tpu.matmul %10, %12, %cst_11 {dimension_numbers = #tpu.dot_dimension_numbers<[1], [1], [0], [0], [0, 0, 1, 0], [], []>} : vector<2x256xf32>, vector<2x256xf32>, vector<2x2xf32> -> vector<2x2xf32>
    %14 = arith.addf %11, %13 : vector<2x2xf32>
    %c0_12 = arith.constant 0 : index
    %c0_13 = arith.constant 0 : index
    %15 = vector.load %arg8[%c0_12, %c0_13] : memref<2x2xf32, #tpu.memory_space<vmem>>, vector<2x2xf32>
    tpu.vector_store %arg8[%c0_12, %c0_13], %14 {strides = array<i32>} : memref<2x2xf32, #tpu.memory_space<vmem>>, vector<2x2xf32>,
    %c0_i32_14 = arith.constant 0 : i32
    %16 = arith.cmpi eq, %arg1, %c0_i32_14 : i32
    %17 = arith.extui %16 : i1 to i32
    %c0_i32_15 = arith.constant 0 : i32
    %18 = arith.cmpi ne, %17, %c0_i32_15 : i32
    scf.if %18 {
      %c0_16 = arith.constant 0 : index
      %c0_17 = arith.constant 0 : index
      %19 = vector.load %arg8[%c0_16, %c0_17] : memref<2x2xf32, #tpu.memory_space<vmem>>, vector<2x2xf32>
      %c0_i32_18 = arith.constant 0 : i32
      %20 = arith.cmpi eq, %arg0, %c0_i32_18 : i32
      %21 = arith.extui %20 : i1 to i32
      %22 = arith.sitofp %21 : i32 to f32
      %c0_19 = arith.constant 0 : index
      %c0_20 = arith.constant 0 : index
      %23 = vector.load %arg6[%c0_19, %c0_20] : memref<1x2xf32, #tpu.memory_space<vmem>>, vector<1x2xf32>
      %24 = vector.broadcast %22 : f32 to vector<1x2xf32>
      %25 = arith.mulf %24, %23 : vector<1x2xf32>
      %26 = vector.broadcast %25 : vector<1x2xf32> to vector<2x2xf32>
      %27 = arith.addf %19, %26 : vector<2x2xf32>
      %c0_21 = arith.constant 0 : index
      %c0_22 = arith.constant 0 : index
      %28 = vector.load %arg7[%c0_21, %c0_22] : memref<2x2xf32, #tpu.memory_space<vmem>>, vector<2x2xf32>
      tpu.vector_store %arg7[%c0_21, %c0_22], %27 {strides = array<i32>} : memref<2x2xf32, #tpu.memory_space<vmem>>, vector<2x2xf32>,
    } else {
    }
    return
  }
  func.func @transform_0(%arg0: i32, %arg1: i32) -> (i32, i32) {
    %c0_i32 = arith.constant 0 : i32
    %c0_i32_0 = arith.constant 0 : i32
    %c0_i32_1 = arith.constant 0 : i32
    return %c0_i32, %c0_i32_0 : i32, i32
  }
  func.func @transform_1(%arg0: i32, %arg1: i32) -> (i32, i32) {
    %c1_i32 = arith.constant 1 : i32
    %0 = arith.muli %arg0, %c1_i32 : i32
    %1 = arith.addi %0, %arg1 : i32
    %c0_i32 = arith.constant 0 : i32
    %c0_i32_0 = arith.constant 0 : i32
    return %c0_i32, %1 : i32, i32
  }
  func.func @transform_2(%arg0: i32, %arg1: i32) -> (i32, i32) {
    %c1_i32 = arith.constant 1 : i32
    %0 = arith.muli %arg0, %c1_i32 : i32
    %1 = arith.addi %0, %arg1 : i32
    %c0_i32 = arith.constant 0 : i32
    %c0_i32_0 = arith.constant 0 : i32
    return %c0_i32, %1 : i32, i32
  }
  func.func @transform_3(%arg0: i32, %arg1: i32) -> (i32, i32) {
    %c1_i32 = arith.constant 1 : i32
    %0 = arith.muli %arg0, %c1_i32 : i32
    %1 = arith.addi %0, %arg1 : i32
    %c0_i32 = arith.constant 0 : i32
    %c0_i32_0 = arith.constant 0 : i32
    return %c0_i32, %1 : i32, i32
  }
  func.func @transform_4(%arg0: i32, %arg1: i32) -> (i32, i32) {
    %c0_i32 = arith.constant 0 : i32
    %c0_i32_0 = arith.constant 0 : i32
    %c0_i32_1 = arith.constant 0 : i32
    return %c0_i32, %c0_i32_0 : i32, i32
  }
  func.func @transform_5(%arg0: i32, %arg1: i32) -> (i32, i32) {
    %c0_i32 = arith.constant 0 : i32
    %c0_i32_0 = arith.constant 0 : i32
    %c0_i32_1 = arith.constant 0 : i32
    return %c0_i32, %c0_i32_0 : i32, i32
  }
}

</mosaic_0001>

<llo_original>
// kernel: tpu_custom_call.1
$region0: #{tpu_custom_call.1}
  #allocation0 [shape = 'u32[]', space=smem, size = 0x4, offset = 0x4, fixed_abs, tag = 'smem constant byte address 0x4 - core index']
  #allocation1 [shape = 'u32[72,128]{1,0:T(1,128)}', space=vmem, size = 0x9000, scoped, tag = 'internal scratch']
  #allocation2 [shape = 'f32[2,2]{1,0:T(2,128)}', space=vmem, size = 0x400, scoped, tag = 'scratch operand']
  %s0 = inlined_call_operand.hbm [shape: bf16[2,32], index: 0, kind: input, shape index: {}]
  %s1 = inlined_call_operand.hbm [shape: bf16[32,256], index: 1, kind: input, shape index: {}]
  %s2 = inlined_call_operand.hbm [shape: f32[1,256], index: 2, kind: input, shape index: {}]
  %s3 = inlined_call_operand.hbm [shape: f32[2,256], index: 3, kind: input, shape index: {}]
  %s4 = inlined_call_operand.vmem [shape: f32[1,2], index: 4, kind: input, shape index: {}]
  %s5 = inlined_call_operand.hbm [shape: f32[2,2], index: 5, kind: output, shape index: {}]
  %s6 = sld [smem:[#allocation0]]
  $region54: #{tpu_custom_call.1} parent=0
    _
  %s8 = ssub.s32 1, %s6
  %s9 = scalar_select 0, %s8, %s6
  $region1: #{tpu_custom_call.1} parent=0
    #allocation3 [shape = 'u8[512]{0}', space=vmem, size = 0x400, scoped, tag = 'input window, operand 0, single buffered']
    #allocation4 [shape = 's32[1]{0}', space=sflag, size = 0x4, scoped, tag = 'scoped memory for tpu_custom_call.1']
    #allocation5 [shape = 's32[1]{0}', space=sflag, size = 0x4, scoped, tag = 'scoped memory for tpu_custom_call.1']
    #allocation6 [shape = 'u8[16384]{0}', space=vmem, size = 0x4000, scoped, tag = 'input window, operand 1, single buffered']
    #allocation7 [shape = 's32[1]{0}', space=sflag, size = 0x4, scoped, tag = 'scoped memory for tpu_custom_call.1']
    #allocation8 [shape = 'u8[1024]{0}', space=vmem, size = 0x400, scoped, tag = 'input window, operand 2, single buffered']
    #allocation9 [shape = 'u8[2048]{0}', space=vmem, size = 0x800, scoped, tag = 'input window, operand 3, single buffered']
    #allocation10 [shape = 's32[1]{0}', space=sflag, size = 0x4, scoped, tag = 'scoped memory for tpu_custom_call.1']
    #allocation11 [shape = 'u8[1024]{0}', space=vmem, size = 0x400, scoped, tag = 'output window, operand 0, single buffered']
    %10 = vsyncpa [#allocation4], 0
    %11 = vsyncpa [#allocation7], 0
    %12 = vsyncpa [#allocation10], 0
    %13 = vsyncpa [#allocation5], 0
    // Predicated region
    $region2: #{tpu_custom_call.1} parent=1 // pred_check
      _
    $region3: #{tpu_custom_call.1} parent=1 // pred_check_branch
      %15 = sbr.rel (0) target = $region5
    $region4: #{tpu_custom_call.1} parent=1 // pred_region
      %17 = vsyncadd [#allocation4], 0
      %s19 = sshll.u32 %s0, 4
      %s20 = int_to_ptr.hbm [resolvable:$true] %s19
      %s21 = sshll.u32 [#allocation3], 4
      %s22 = int_to_ptr.vmem [resolvable:$true] %s21
      %24 = dma.hbm_to_vmem [thread:$0]  %s20, 16, %s22, [#allocation4]
    $region5: #{tpu_custom_call.1} parent=1 // pred_fallthru
      _
    // Predicated region
    $region6: #{tpu_custom_call.1} parent=1 // pred_check
      _
    $region7: #{tpu_custom_call.1} parent=1 // pred_check_branch
      %26 = sbr.rel (0) target = $region9
    $region8: #{tpu_custom_call.1} parent=1 // pred_region
      %s27 = sadd.s32 0, 0
      %s28 = smul.u32 2, %s27
      %30 = vsyncadd [#allocation7], 0
      %s31 = smul.addr %s28, 4
      %s32 = scalar_lea.hbm %s1, %s31
      %s33 = sshll.u32 %s32, 4
      %s34 = int_to_ptr.hbm [resolvable:$true] %s33
      %s35 = sshll.u32 [#allocation6], 4
      %s36 = int_to_ptr.vmem [resolvable:$true] %s35
      %41 = dma.hbm_to_vmem [thread:$0]  %s34, 512, %s36, [#allocation7], 128, 128, 8
    $region9: #{tpu_custom_call.1} parent=1 // pred_fallthru
      _
    // Predicated region
    $region10: #{tpu_custom_call.1} parent=1 // pred_check
      _
    $region11: #{tpu_custom_call.1} parent=1 // pred_check_branch
      %43 = sbr.rel (0) target = $region13
    $region12: #{tpu_custom_call.1} parent=1 // pred_region
      %s44 = sadd.s32 0, 0
      %s45 = smul.u32 2, %s44
      %47 = vsyncadd [#allocation7], 0
      %s48 = scalar_lea.hbm %s2, %s45
      %s50 = sshll.u32 %s48, 4
      %s51 = int_to_ptr.hbm [resolvable:$true] %s50
      %s52 = sshll.u32 [#allocation8], 4
      %s53 = int_to_ptr.vmem [resolvable:$true] %s52
      %55 = dma.hbm_to_vmem [thread:$0]  %s51, 32, %s53, [#allocation7]
    $region13: #{tpu_custom_call.1} parent=1 // pred_fallthru
      _
    // Predicated region
    $region14: #{tpu_custom_call.1} parent=1 // pred_check
      _
    $region15: #{tpu_custom_call.1} parent=1 // pred_check_branch
      %57 = sbr.rel (0) target = $region17
    $region16: #{tpu_custom_call.1} parent=1 // pred_region
      %s58 = sadd.s32 0, 0
      %s59 = smul.u32 2, %s58
      %61 = vsyncadd [#allocation10], 0
      %s62 = smul.addr %s59, 2
      %s63 = scalar_lea.hbm %s3, %s62
      %s65 = sshll.u32 %s63, 4
      %s66 = int_to_ptr.hbm [resolvable:$true] %s65
      %s67 = sshll.u32 [#allocation9], 4
      %s68 = int_to_ptr.vmem [resolvable:$true] %s67
      %70 = dma.hbm_to_vmem [thread:$0]  %s66, 64, %s68, [#allocation10]
    $region17: #{tpu_custom_call.1} parent=1 // pred_fallthru
      _
    // Predicated region
    $region18: #{tpu_custom_call.1} parent=1 // pred_check
      _
    $region19: #{tpu_custom_call.1} parent=1 // pred_check_branch
      %72 = sbr.rel (0) target = $region21
    $region20: #{tpu_custom_call.1} parent=1 // pred_region
      _
    $region21: #{tpu_custom_call.1} parent=1 // pred_fallthru
      _
    // Predicated region
    $region22: #{tpu_custom_call.1} parent=1 // pred_check
      _
    $region23: #{tpu_custom_call.1} parent=1 // pred_check_branch
      %74 = sbr.rel (0) target = $region25
    $region24: #{tpu_custom_call.1} parent=1 // pred_region
      %76 = dma.done [#allocation4], 16
    $region25: #{tpu_custom_call.1} parent=1 // pred_fallthru
      _
    // Predicated region
    $region26: #{tpu_custom_call.1} parent=1 // pred_check
      _
    $region27: #{tpu_custom_call.1} parent=1 // pred_check_branch
      %78 = sbr.rel (0) target = $region29
    $region28: #{tpu_custom_call.1} parent=1 // pred_region
      %80 = dma.done [#allocation7], 512
    $region29: #{tpu_custom_call.1} parent=1 // pred_fallthru
      _
    // Predicated region
    $region30: #{tpu_custom_call.1} parent=1 // pred_check
      _
    $region31: #{tpu_custom_call.1} parent=1 // pred_check_branch
      %82 = sbr.rel (0) target = $region33
    $region32: #{tpu_custom_call.1} parent=1 // pred_region
      %84 = dma.done [#allocation7], 32
    $region33: #{tpu_custom_call.1} parent=1 // pred_fallthru
      _
    // Predicated region
    $region34: #{tpu_custom_call.1} parent=1 // pred_check
      _
    $region35: #{tpu_custom_call.1} parent=1 // pred_check_branch
      %86 = sbr.rel (0) target = $region37
    $region36: #{tpu_custom_call.1} parent=1 // pred_region
      %88 = dma.done [#allocation10], 64
    $region37: #{tpu_custom_call.1} parent=1 // pred_fallthru
      _
    %s89 = sadd.s32 0, 0
    %s90 = smul.u32 2, %s89
    %s91 = sadd.s32 0, 0
    %s92 = smul.u32 2, %s91
    %s93 = sadd.s32 0, 0
    %s94 = smul.u32 2, %s93
    %p96 = scmp.eq.s32.totalorder 0, 0
    // Predicated region
    $region38: #{tpu_custom_call.1} parent=1 // pred_check
      %p97 = pneg %p96
    $region39: #{tpu_custom_call.1} parent=1 // pred_check_branch
      %99 = sbr.rel (%p97) target = $region41
    $region40: #{tpu_custom_call.1} parent=1 // pred_region
      %vm100 = vcmask 9216
      %101 = vst.msk [vmem:[#allocation2] sm:$0x3] %vm100, 0.0
    $region41: #{tpu_custom_call.1} parent=1 // pred_fallthru
      _
    %v102 = vld [vmem:[#allocation3] sm:$0x1]
    %v103 = vld [vmem:[#allocation6] sm:$0xff]
    %v104 = vld [vmem:[#allocation6 + $0x8] sm:$0xff]
    %v105 = vld [vmem:[#allocation6 + $0x10] sm:$0xff]
    %v106 = vld [vmem:[#allocation6 + $0x18] sm:$0xff]
    %v107 = vld [vmem:[#allocation8] sm:$0x3]
    %v109 = vperm.slane %v107, 0
    %v110 = vperm.slane %v107, 1
    %v117 = vunpack.c.l.b16 %v103
    %v118 = vunpack.c.h.b16 %v103
    %v119 = vunpack.c.l.b16 %v104
    %v120 = vunpack.c.h.b16 %v104
    %v121 = vunpack.c.l.b16 %v105
    %v122 = vunpack.c.h.b16 %v105
    %v123 = vunpack.c.l.b16 %v106
    %v124 = vunpack.c.h.b16 %v106
    %v125 = vpack.c.b16 %v119, %v117
    %v126 = vpack.c.b16 %v120, %v118
    %v127 = vpack.c.b16 %v123, %v121
    %v128 = vpack.c.b16 %v124, %v122
    %vm133 = vcmask 261120
    %v135 = vsel %vm133, %v102, 0
    %137 = vmatpush.bf16.msra.mxu0 0
    %138 = vmatpush.bf16.msra.mxu0 0
    %139 = vmatpush.bf16.msra.mxu0 0
    %140 = vmatpush.bf16.msra.mxu0 0
    %141 = vmatpush.bf16.msra.mxu0 0
    %142 = vmatpush.bf16.msra.mxu0 0
    %143 = vmatpush.bf16.msra.mxu0 %v127
    %144 = vmatpush.bf16.msra.mxu0 %v125
    %145 = vmatmul.bf16.gmra.mxu0 %v135
    %v146 = vpop.f32.mrf.mxu0
    %v147 = vadd.f32 %v109, %v146
    %v148 = vpop.f32.mrf.mxu0
    %149 = vdwg.mxu0
    %150 = vmatpush.bf16.msra.mxu0 0
    %151 = vmatpush.bf16.msra.mxu0 0
    %152 = vmatpush.bf16.msra.mxu0 0
    %153 = vmatpush.bf16.msra.mxu0 0
    %154 = vmatpush.bf16.msra.mxu0 0
    %155 = vmatpush.bf16.msra.mxu0 0
    %156 = vmatpush.bf16.msra.mxu0 %v128
    %157 = vmatpush.bf16.msra.mxu0 %v126
    %158 = vmatmul.bf16.gmra.mxu0 %v135
    %v159 = vpop.f32.mrf.mxu0
    %v160 = vadd.f32 %v110, %v159
    %v161 = vpop.f32.mrf.mxu0
    %162 = vdwg.mxu0
    %v163 = vmax.f32 %v147, 0.0
    %v164 = vmax.f32 %v160, 0.0
    %v165 = vld [vmem:[#allocation2] sm:$0x3]
    %v166 = vld [vmem:[#allocation9] sm:$0xf]
    %168 = vst [vmem:[#allocation1] ss:$4 sm:$0xff] %v166
    %v169 = vld.sshfl [vmem:[#allocation1] sm:$0xff pattern:$0x73625140]
    %v170 = vld.sshfl [vmem:[#allocation1 + $0x8] sm:$0xff pattern:$0x73625140]
    %173 = vmatpush.xpose.msra.mxu0 0.0
    %174 = vmatpush.xpose.msra.mxu0 0.0
    %175 = vmatpush.xpose.msra.mxu0 0.0
    %176 = vmatpush.xpose.msra.mxu0 0.0
    %177 = vmatpush.xpose.msra.mxu0 0.0
    %178 = vmatpush.xpose.msra.mxu0 0.0
    %179 = vmatpush.xpose.msra.mxu0 0.0
    %180 = vmatpush.xpose.msra.mxu0 0.0
    %181 = vmatpush.xpose.msra.mxu0 0.0
    %182 = vmatpush.xpose.msra.mxu0 0.0
    %183 = vmatpush.xpose.msra.mxu0 0.0
    %184 = vmatpush.xpose.msra.mxu0 0.0
    %185 = vmatpush.xpose.msra.mxu0 0.0
    %186 = vmatpush.xpose.msra.mxu0 0.0
    %187 = vmatpush.xpose.msra.mxu0 0.0
    %188 = vmatpush.xpose.msra.mxu0 %v169
    %189 = vmatmul.f32.gmra.mxu0 %v163
    %v190 = vpop.f32.mrf.mxu0
    %v191 = vadd.f32 0.0, %v190
    %192 = vdwg.mxu0
    %193 = vmatpush.xpose.msra.mxu0 0.0
    %194 = vmatpush.xpose.msra.mxu0 0.0
    %195 = vmatpush.xpose.msra.mxu0 0.0
    %196 = vmatpush.xpose.msra.mxu0 0.0
    %197 = vmatpush.xpose.msra.mxu0 0.0
    %198 = vmatpush.xpose.msra.mxu0 0.0
    %199 = vmatpush.xpose.msra.mxu0 0.0
    %200 = vmatpush.xpose.msra.mxu0 0.0
    %201 = vmatpush.xpose.msra.mxu0 0.0
    %202 = vmatpush.xpose.msra.mxu0 0.0
    %203 = vmatpush.xpose.msra.mxu0 0.0
    %204 = vmatpush.xpose.msra.mxu0 0.0
    %205 = vmatpush.xpose.msra.mxu0 0.0
    %206 = vmatpush.xpose.msra.mxu0 0.0
    %207 = vmatpush.xpose.msra.mxu0 0.0
    %208 = vmatpush.xpose.msra.mxu0 %v170
    %209 = vmatmul.f32.gmra.mxu0 %v164
    %v210 = vpop.f32.mrf.mxu0
    %v211 = vadd.f32 %v191, %v210
    %212 = vdwg.mxu0
    %v213 = vadd.f32 %v165, %v211
    %vm214 = vcmask 9216
    %215 = vst.msk [vmem:[#allocation2] sm:$0x3] %vm214, %v213
    // Predicated region
    $region42: #{tpu_custom_call.1} parent=1 // pred_check
      %p216 = pneg %p96
    $region43: #{tpu_custom_call.1} parent=1 // pred_check_branch
      %218 = sbr.rel (%p216) target = $region45
    $region44: #{tpu_custom_call.1} parent=1 // pred_region
      %v219 = vld [vmem:[#allocation2] sm:$0x3]
      %p220 = scmp.eq.s32.totalorder 0, 0
      %s221 = scalar_select %p220, 1, 0
      %s222 = scvt.s32.f32 %s221
      %v223 = vld [vmem:[%s4] sm:$0x1]
      %v224 = vstv %s222
      %v225 = vmul.f32 %v224, %v223
      %v227 = vperm.slane %v225, 0
      %v229 = vadd.f32 %v219, %v227
      %230 = vst.msk [vmem:[#allocation11] sm:$0x3] %vm214, %v229
    $region45: #{tpu_custom_call.1} parent=1 // pred_fallthru
      _
    // Predicated region
    $region46: #{tpu_custom_call.1} parent=1 // pred_check
      _
    $region47: #{tpu_custom_call.1} parent=1 // pred_check_branch
      %232 = sbr.rel (0) target = $region49
    $region48: #{tpu_custom_call.1} parent=1 // pred_region
      %234 = vsyncadd [#allocation5], 0
      %s236 = sshll.u32 [#allocation11], 4
      %s237 = int_to_ptr.vmem [resolvable:$true] %s236
      %s238 = sshll.u32 %s5, 4
      %s239 = int_to_ptr.hbm [resolvable:$true] %s238
      %241 = dma.vmem_to_hbm [thread:$0]  %s237, 32, %s239, [#allocation5]
    $region49: #{tpu_custom_call.1} parent=1 // pred_fallthru
      _
    // Predicated region
    $region50: #{tpu_custom_call.1} parent=1 // pred_check
      _
    $region51: #{tpu_custom_call.1} parent=1 // pred_check_branch
      %243 = sbr.rel (0) target = $region53
    $region52: #{tpu_custom_call.1} parent=1 // pred_region
      %245 = dma.done [#allocation5], 32
    $region53: #{tpu_custom_call.1} parent=1 // pred_fallthru
      _
    %246 = vsyncpa [#allocation4], 1
    %247 = vsyncpa [#allocation7], 1
    %248 = vsyncpa [#allocation10], 1
    %249 = vsyncpa [#allocation5], 1

</llo_original>
